<compile_context>
chip_gen: v7x
topology: tpu7x:2x2x1
jax: 0.10.0
libtpu: 0.0.40
codegen_flags: <defaults>
</compile_context>

<pallas_src>
import jax
import jax.numpy as jnp
import numpy as np
from jax import lax
from jax.experimental import pallas as pl
from jax.experimental.pallas import tpu as pltpu

BN_EPS = 1e-5


def _fused_conv_bn_relu_kernel(lhs_ref, wk_ref, gamma_ref, beta_ref,
                               fold_ref, bcast_ref, o_ref):
    """Fused 3x3 conv + training-mode BatchNorm + ReLU for the whole batch.

    lhs_ref   : (M, 3K)    M = N*H rows; K = (W+2)*Cin, kh folded into K
    wk_ref    : (3K, WC)   Toeplitz weights, WC = W*Cout (lane-dense output)
    gamma_ref : (1, Cout)  BN weight
    beta_ref  : (1, Cout)  BN bias
    fold_ref  : (WC, Cout) constant 0/1 matrix: lane l -> channel l % Cout
    bcast_ref : (Cout, WC) constant 0/1 matrix: channel -> lanes (fold^T)
    o_ref     : (M, WC)    relu(bn(conv)) slab, lane-dense
    """
    M, WC = o_ref.shape
    Cout = fold_ref.shape[1]
    W = WC // Cout
    cnt = jnp.float32(M * W)           # elements per channel = N*H*W

    # --- 3x3 conv for the whole batch: ONE MXU contraction (M x 3K x WC) ---
    conv = jnp.dot(lhs_ref[...], wk_ref[...],
                   preferred_element_type=jnp.float32)          # (M, WC)

    fold = fold_ref[...]
    bcast = bcast_ref[...]

    # --- BN batch statistics (two-pass; matches reference numerics) ---
    sum_wc = jnp.sum(conv, axis=0, keepdims=True)               # (1, WC)
    mean_c = jnp.dot(sum_wc, fold,
                     preferred_element_type=jnp.float32) / cnt  # (1, Cout)
    mean_wc = jnp.dot(mean_c, bcast,
                      preferred_element_type=jnp.float32)       # (1, WC)
    centered = conv - mean_wc                                   # (M, WC)
    sq_wc = jnp.sum(centered * centered, axis=0, keepdims=True) # (1, WC)
    var_c = jnp.dot(sq_wc, fold,
                    preferred_element_type=jnp.float32) / cnt   # (1, Cout)
    inv_std = lax.rsqrt(var_c + BN_EPS)                         # (1, Cout)

    # --- fold gamma/beta into per-lane scale/shift and apply + ReLU ---
    scale_c = gamma_ref[...] * inv_std                          # (1, Cout)
    scale_wc = jnp.dot(scale_c, bcast,
                       preferred_element_type=jnp.float32)      # (1, WC)
    beta_wc = jnp.dot(beta_ref[...], bcast,
                      preferred_element_type=jnp.float32)       # (1, WC)

    o_ref[...] = jnp.maximum(centered * scale_wc + beta_wc, 0.0)


@jax.jit
def conv_block(x_nchw, w_oihw, bias, gamma, beta):
    """Forward pass of ConvBlock. Input NCHW, output NCHW (matches PyTorch)."""
    del bias  # cancels exactly under training-mode BatchNorm (batch-mean subtraction)
    N, Cin, H, W = x_nchw.shape
    Cout = w_oihw.shape[0]
    WC = W * Cout
    K = (W + 2) * Cin

    # ---- NCHW -> NHWC, zero pad H/W by 1, collapse (W+2, Cin) into lanes ----
    x = jnp.transpose(x_nchw, (0, 2, 3, 1)).astype(jnp.float32)      # (N,H,W,Cin)
    xp = jnp.pad(x, ((0, 0), (1, 1), (1, 1), (0, 0)))                # (N,H+2,W+2,Cin)
    xp2 = xp.reshape(N, H + 2, K)

    # ---- fold the kh tap into K: one (N*H, 3K) LHS for a single matmul ----
    lhs = jnp.concatenate(
        [xp2[:, 0:H], xp2[:, 1:H + 1], xp2[:, 2:H + 2]], axis=-1)    # (N,H,3K)
    lhs = lhs.reshape(N * H, 3 * K)

    # ---- Toeplitz weight: kh and kw folded into K, output lanes = W*Cout ----
    # TODO(synk): cache wk across calls when the conv weights are reused.
    sel = (np.arange(W + 2)[None, :, None]
           == np.arange(W)[None, None, :]
           + np.arange(3)[:, None, None]).astype(np.float32)         # (3, W+2, W)
    w_hwio = jnp.transpose(w_oihw, (2, 3, 1, 0)).astype(jnp.float32) # (3,3,Cin,Cout)
    wk = jnp.einsum('aqw,kaio->kqiwo', jnp.asarray(sel), w_hwio)     # (3,W+2,Cin,W,Cout)
    wk = wk.reshape(3 * K, WC)

    # ---- constant 0/1 lane<->channel fold / broadcast matrices (host-built) ----
    fold_np = (np.arange(WC)[:, None] % Cout
               == np.arange(Cout)[None, :]).astype(np.float32)       # (WC, Cout)
    fold = jnp.asarray(fold_np)
    bcast = jnp.asarray(np.ascontiguousarray(fold_np.T))             # (Cout, WC)

    gamma2 = gamma.astype(jnp.float32).reshape(1, Cout)
    beta2 = beta.astype(jnp.float32).reshape(1, Cout)

    # Grid-less call: everything (~0.4 MiB) is VMEM-resident, single invocation.
    y_slab = pl.pallas_call(
        _fused_conv_bn_relu_kernel,
        out_shape=jax.ShapeDtypeStruct((N * H, WC), jnp.float32),
    )(lhs, wk, gamma2, beta2, fold, bcast)

    out = y_slab.reshape(N, H, W, Cout)
    return jnp.transpose(out, (0, 3, 1, 2))                          # NHWC -> NCHW


def reference(x_nchw, w_oihw, bias, gamma, beta):
    """Pure-JAX reference (same math, no Pallas) for verification."""
    x = jnp.transpose(x_nchw, (0, 2, 3, 1))
    w_hwio = jnp.transpose(w_oihw, (2, 3, 1, 0))
    conv = lax.conv_general_dilated(
        x, w_hwio, window_strides=(1, 1), padding="SAME",
        dimension_numbers=("NHWC", "HWIO", "NHWC")) + bias
    mean = jnp.mean(conv, axis=(0, 1, 2), keepdims=True)
    var = jnp.mean((conv - mean) ** 2, axis=(0, 1, 2), keepdims=True)
    y = (conv - mean) * lax.rsqrt(var + BN_EPS) * gamma + beta
    return jnp.transpose(jnp.maximum(y, 0.0), (0, 3, 1, 2))


if __name__ == "__main__":
    # Shapes consistent with ConvBlock(in_channels=4, out_channels=8)
    N, Cin, Cout, H, W = 2, 4, 8, 16, 16

    key = jax.random.PRNGKey(0)
    kx, kw_, kb = jax.random.split(key, 3)

    x = jax.random.normal(kx, (N, Cin, H, W), dtype=jnp.float32)           # NCHW
    conv_w = jax.random.normal(kw_, (Cout, Cin, 3, 3), dtype=jnp.float32) * 0.1
    conv_b = jax.random.normal(kb, (Cout,), dtype=jnp.float32) * 0.1
    bn_gamma = jnp.ones((Cout,), dtype=jnp.float32)    # nn.BatchNorm2d default init
    bn_beta = jnp.zeros((Cout,), dtype=jnp.float32)

    out = jax.block_until_ready(conv_block(x, conv_w, conv_b, bn_gamma, bn_beta))
    ref = jax.block_until_ready(reference(x, conv_w, conv_b, bn_gamma, bn_beta))
    np.testing.assert_allclose(np.asarray(out), np.asarray(ref), rtol=1e-4, atol=1e-4)

    print("KERNEL_OK")
</pallas_src>

<mosaic_0001>
module attributes {stable_mosaic.version = 11 : i64} {
  func.func @_fused_conv_bn_relu_kernel(%arg0: memref<32x216xf32, #tpu.memory_space<vmem>>, %arg1: memref<216x128xf32, #tpu.memory_space<vmem>>, %arg2: memref<1x8xf32, #tpu.memory_space<vmem>>, %arg3: memref<1x8xf32, #tpu.memory_space<vmem>>, %arg4: memref<128x8xf32, #tpu.memory_space<vmem>>, %arg5: memref<8x128xf32, #tpu.memory_space<vmem>>, %arg6: memref<32x128xf32, #tpu.memory_space<vmem>>) attributes {dimension_semantics = [], scalar_prefetch = 0 : i64, scratch_operands = 0 : i64, tpu.core_type = #tpu.core_type<tc>} {
    %c0 = arith.constant 0 : index
    %c0_0 = arith.constant 0 : index
    %0 = vector.load %arg0[%c0, %c0_0] : memref<32x216xf32, #tpu.memory_space<vmem>>, vector<32x216xf32>
    %c0_1 = arith.constant 0 : index
    %c0_2 = arith.constant 0 : index
    %1 = vector.load %arg1[%c0_1, %c0_2] : memref<216x128xf32, #tpu.memory_space<vmem>>, vector<216x128xf32>
    %cst = arith.constant dense<0.000000e+00> : vector<32x128xf32>
    %2 = tpu.matmul %0, %1, %cst {dimension_numbers = #tpu.dot_dimension_numbers<[1], [0], [0], [1], [0, 0, 1, 1], [], []>} : vector<32x216xf32>, vector<216x128xf32>, vector<32x128xf32> -> vector<32x128xf32>
    %c0_3 = arith.constant 0 : index
    %c0_4 = arith.constant 0 : index
    %3 = vector.load %arg4[%c0_3, %c0_4] : memref<128x8xf32, #tpu.memory_space<vmem>>, vector<128x8xf32>
    %c0_5 = arith.constant 0 : index
    %c0_6 = arith.constant 0 : index
    %4 = vector.load %arg5[%c0_5, %c0_6] : memref<8x128xf32, #tpu.memory_space<vmem>>, vector<8x128xf32>
    %cst_7 = arith.constant dense<0.000000e+00> : vector<128xf32>
    %5 = vector.multi_reduction <add>, %2, %cst_7 [0] : vector<32x128xf32> to vector<128xf32>
    %6 = vector.shape_cast %5 : vector<128xf32> to vector<1x128xf32>
    %cst_8 = arith.constant dense<0.000000e+00> : vector<1x8xf32>
    %7 = tpu.matmul %6, %3, %cst_8 {dimension_numbers = #tpu.dot_dimension_numbers<[1], [0], [0], [1], [0, 0, 1, 1], [], []>} : vector<1x128xf32>, vector<128x8xf32>, vector<1x8xf32> -> vector<1x8xf32>
    %cst_9 = arith.constant 5.120000e+02 : f32
    %8 = vector.broadcast %cst_9 : f32 to vector<1x8xf32>
    %9 = arith.divf %7, %8 : vector<1x8xf32>
    %cst_10 = arith.constant dense<0.000000e+00> : vector<1x128xf32>
    %10 = tpu.matmul %9, %4, %cst_10 {dimension_numbers = #tpu.dot_dimension_numbers<[1], [0], [0], [1], [0, 0, 1, 1], [], []>} : vector<1x8xf32>, vector<8x128xf32>, vector<1x128xf32> -> vector<1x128xf32>
    %11 = vector.broadcast %10 : vector<1x128xf32> to vector<32x128xf32>
    %12 = arith.subf %2, %11 : vector<32x128xf32>
    %13 = arith.mulf %12, %12 : vector<32x128xf32>
    %cst_11 = arith.constant dense<0.000000e+00> : vector<128xf32>
    %14 = vector.multi_reduction <add>, %13, %cst_11 [0] : vector<32x128xf32> to vector<128xf32>
    %15 = vector.shape_cast %14 : vector<128xf32> to vector<1x128xf32>
    %cst_12 = arith.constant dense<0.000000e+00> : vector<1x8xf32>
    %16 = tpu.matmul %15, %3, %cst_12 {dimension_numbers = #tpu.dot_dimension_numbers<[1], [0], [0], [1], [0, 0, 1, 1], [], []>} : vector<1x128xf32>, vector<128x8xf32>, vector<1x8xf32> -> vector<1x8xf32>
    %cst_13 = arith.constant 5.120000e+02 : f32
    %17 = vector.broadcast %cst_13 : f32 to vector<1x8xf32>
    %18 = arith.divf %16, %17 : vector<1x8xf32>
    %cst_14 = arith.constant 9.99999974E-6 : f32
    %19 = vector.broadcast %cst_14 : f32 to vector<1x8xf32>
    %20 = arith.addf %18, %19 : vector<1x8xf32>
    %21 = math.rsqrt %20 : vector<1x8xf32>
    %c0_15 = arith.constant 0 : index
    %c0_16 = arith.constant 0 : index
    %22 = vector.load %arg2[%c0_15, %c0_16] : memref<1x8xf32, #tpu.memory_space<vmem>>, vector<1x8xf32>
    %23 = arith.mulf %22, %21 : vector<1x8xf32>
    %cst_17 = arith.constant dense<0.000000e+00> : vector<1x128xf32>
    %24 = tpu.matmul %23, %4, %cst_17 {dimension_numbers = #tpu.dot_dimension_numbers<[1], [0], [0], [1], [0, 0, 1, 1], [], []>} : vector<1x8xf32>, vector<8x128xf32>, vector<1x128xf32> -> vector<1x128xf32>
    %c0_18 = arith.constant 0 : index
    %c0_19 = arith.constant 0 : index
    %25 = vector.load %arg3[%c0_18, %c0_19] : memref<1x8xf32, #tpu.memory_space<vmem>>, vector<1x8xf32>
    %cst_20 = arith.constant dense<0.000000e+00> : vector<1x128xf32>
    %26 = tpu.matmul %25, %4, %cst_20 {dimension_numbers = #tpu.dot_dimension_numbers<[1], [0], [0], [1], [0, 0, 1, 1], [], []>} : vector<1x8xf32>, vector<8x128xf32>, vector<1x128xf32> -> vector<1x128xf32>
    %27 = vector.broadcast %24 : vector<1x128xf32> to vector<32x128xf32>
    %28 = arith.mulf %12, %27 : vector<32x128xf32>
    %29 = vector.broadcast %26 : vector<1x128xf32> to vector<32x128xf32>
    %30 = arith.addf %28, %29 : vector<32x128xf32>
    %cst_21 = arith.constant 0.000000e+00 : f32
    %31 = vector.broadcast %cst_21 : f32 to vector<32x128xf32>
    %32 = arith.maximumf %30, %31 : vector<32x128xf32>
    %c0_22 = arith.constant 0 : index
    %c0_23 = arith.constant 0 : index
    %33 = vector.load %arg6[%c0_22, %c0_23] : memref<32x128xf32, #tpu.memory_space<vmem>>, vector<32x128xf32>
    tpu.vector_store %arg6[%c0_22, %c0_23], %32 {strides = array<i32>} : memref<32x128xf32, #tpu.memory_space<vmem>>, vector<32x128xf32>,
    return
  }
}

</mosaic_0001>

<llo_original>
// kernel: conv_block.1
$region0: #{conv_block.1}
  #allocation0 [shape = 'u32[]', space=smem, size = 0x4, offset = 0x4, fixed_abs, tag = 'smem constant byte address 0x4 - core index']
  #allocation1 [shape = 'u32[144,128]{1,0:T(1,128)}', space=vmem, size = 0x12000, scoped, tag = 'internal scratch']
  %s0 = inlined_call_operand.vmem [shape: f32[32,216], index: 0, kind: input, shape index: {}]
  %s1 = inlined_call_operand.vmem [shape: f32[216,128], index: 1, kind: input, shape index: {}]
  %s2 = inlined_call_operand.vmem [shape: f32[1,8], index: 2, kind: input, shape index: {}]
  %s3 = inlined_call_operand.vmem [shape: f32[1,8], index: 3, kind: input, shape index: {}]
  %s4 = inlined_call_operand.vmem [shape: f32[128,8], index: 4, kind: input, shape index: {}]
  %s5 = inlined_call_operand.vmem [shape: f32[8,128], index: 5, kind: input, shape index: {}]
  %s6 = inlined_call_operand.vmem [shape: f32[32,128], index: 6, kind: output, shape index: {}]
  %s7 = sld [smem:[#allocation0]]
  $region34: #{conv_block.1} parent=0
    _
  %s9 = ssub.s32 1, %s7
  %s10 = scalar_select 0, %s9, %s7
  // Predicated region
  $region2: #{conv_block.1} parent=0 // pred_check
    _
  $region3: #{conv_block.1} parent=0 // pred_check_branch
    %12 = sbr.rel (0) target = $region5
  $region4: #{conv_block.1} parent=0 // pred_region
    _
  $region5: #{conv_block.1} parent=0 // pred_fallthru
    _
  // Predicated region
  $region6: #{conv_block.1} parent=0 // pred_check
    _
  $region7: #{conv_block.1} parent=0 // pred_check_branch
    %14 = sbr.rel (0) target = $region9
  $region8: #{conv_block.1} parent=0 // pred_region
    _
  $region9: #{conv_block.1} parent=0 // pred_fallthru
    _
  // Predicated region
  $region10: #{conv_block.1} parent=0 // pred_check
    _
  $region11: #{conv_block.1} parent=0 // pred_check_branch
    %16 = sbr.rel (0) target = $region13
  $region12: #{conv_block.1} parent=0 // pred_region
    _
  $region13: #{conv_block.1} parent=0 // pred_fallthru
    _
  // Predicated region
  $region14: #{conv_block.1} parent=0 // pred_check
    _
  $region15: #{conv_block.1} parent=0 // pred_check_branch
    %18 = sbr.rel (0) target = $region17
  $region16: #{conv_block.1} parent=0 // pred_region
    _
  $region17: #{conv_block.1} parent=0 // pred_fallthru
    _
  // Predicated region
  $region18: #{conv_block.1} parent=0 // pred_check
    _
  $region19: #{conv_block.1} parent=0 // pred_check_branch
    %20 = sbr.rel (0) target = $region21
  $region20: #{conv_block.1} parent=0 // pred_region
    _
  $region21: #{conv_block.1} parent=0 // pred_fallthru
    _
  // Predicated region
  $region22: #{conv_block.1} parent=0 // pred_check
    _
  $region23: #{conv_block.1} parent=0 // pred_check_branch
    %22 = sbr.rel (0) target = $region25
  $region24: #{conv_block.1} parent=0 // pred_region
    _
  $region25: #{conv_block.1} parent=0 // pred_fallthru
    _
  %v23 = vld [vmem:[%s0] sm:$0xff]
  %v24 = vld [vmem:[%s0 + $0x8] sm:$0xff]
  %v25 = vld [vmem:[%s0 + $0x10] sm:$0xff]
  %v26 = vld [vmem:[%s0 + $0x18] sm:$0xff]
  %v27 = vld [vmem:[%s0 + $0x20] sm:$0xff]
  %v28 = vld [vmem:[%s0 + $0x28] sm:$0xff]
  %v29 = vld [vmem:[%s0 + $0x30] sm:$0xff]
  %v30 = vld [vmem:[%s0 + $0x38] sm:$0xff]
  %v31 = vld [vmem:[%s1] sm:$0xff]
  %v32 = vld [vmem:[%s1 + $0x8] sm:$0xff]
  %v33 = vld [vmem:[%s1 + $0x10] sm:$0xff]
  %v34 = vld [vmem:[%s1 + $0x18] sm:$0xff]
  %v35 = vld [vmem:[%s1 + $0x20] sm:$0xff]
  %v36 = vld [vmem:[%s1 + $0x28] sm:$0xff]
  %v37 = vld [vmem:[%s1 + $0x30] sm:$0xff]
  %v38 = vld [vmem:[%s1 + $0x38] sm:$0xff]
  %v39 = vld [vmem:[%s1 + $0x40] sm:$0xff]
  %v40 = vld [vmem:[%s1 + $0x48] sm:$0xff]
  %v41 = vld [vmem:[%s1 + $0x50] sm:$0xff]
  %v42 = vld [vmem:[%s1 + $0x58] sm:$0xff]
  %v43 = vld [vmem:[%s1 + $0x60] sm:$0xff]
  %v44 = vld [vmem:[%s1 + $0x68] sm:$0xff]
  %v45 = vld [vmem:[%s1 + $0x70] sm:$0xff]
  %v46 = vld [vmem:[%s1 + $0x78] sm:$0xff]
  %v47 = vld [vmem:[%s1 + $0x80] sm:$0xff]
  %v48 = vld [vmem:[%s1 + $0x88] sm:$0xff]
  %v49 = vld [vmem:[%s1 + $0x90] sm:$0xff]
  %v50 = vld [vmem:[%s1 + $0x98] sm:$0xff]
  %v51 = vld [vmem:[%s1 + $0xa0] sm:$0xff]
  %v52 = vld [vmem:[%s1 + $0xa8] sm:$0xff]
  %v53 = vld [vmem:[%s1 + $0xb0] sm:$0xff]
  %v54 = vld [vmem:[%s1 + $0xb8] sm:$0xff]
  %v55 = vld [vmem:[%s1 + $0xc0] sm:$0xff]
  %v56 = vld [vmem:[%s1 + $0xc8] sm:$0xff]
  %v57 = vld [vmem:[%s1 + $0xd0] sm:$0xff]
  %vm58 = vcmask 719872
  %v60 = vsel %vm58, %v24, 0
  %v63 = vsel %vm58, %v26, 0
  %v66 = vsel %vm58, %v28, 0
  %v69 = vsel %vm58, %v30, 0
  %71 = vmatprep.subr.mxu0 0.0
  %72 = vmatpush1.msra.mxu0 %v31
  %73 = vmatprep.subr.mxu0 0.0
  %74 = vmatpush1.msra.mxu0 %v32
  %75 = vmatprep.subr.mxu0 0.0
  %76 = vmatpush1.msra.mxu0 %v33
  %77 = vmatprep.subr.mxu0 0.0
  %78 = vmatpush1.msra.mxu0 %v34
  %79 = vmatprep.subr.mxu0 0.0
  %80 = vmatpush1.msra.mxu0 %v35
  %81 = vmatprep.subr.mxu0 0.0
  %82 = vmatpush1.msra.mxu0 %v36
  %83 = vmatprep.subr.mxu0 0.0
  %84 = vmatpush1.msra.mxu0 %v37
  %85 = vmatprep.subr.mxu0 0.0
  %86 = vmatpush1.msra.mxu0 %v38
  %87 = vmatprep.subr.mxu0 0.0
  %88 = vmatpush1.msra.mxu0 %v39
  %89 = vmatprep.subr.mxu0 0.0
  %90 = vmatpush1.msra.mxu0 %v40
  %91 = vmatprep.subr.mxu0 0.0
  %92 = vmatpush1.msra.mxu0 %v41
  %93 = vmatprep.subr.mxu0 0.0
  %94 = vmatpush1.msra.mxu0 %v42
  %95 = vmatprep.subr.mxu0 0.0
  %96 = vmatpush1.msra.mxu0 %v43
  %97 = vmatprep.subr.mxu0 0.0
  %98 = vmatpush1.msra.mxu0 %v44
  %99 = vmatprep.subr.mxu0 0.0
  %100 = vmatpush1.msra.mxu0 %v45
  %101 = vmatprep.subr.mxu0 0.0
  %102 = vmatpush1.msra.mxu0 %v46
  %103 = vmatprep.subr.mxu0 0.0
  %104 = vmatpush1.msra.mxu0 %v47
  %105 = vmatprep.subr.mxu0 0.0
  %106 = vmatpush1.msra.mxu0 %v48
  %107 = vmatprep.subr.mxu0 0.0
  %108 = vmatpush1.msra.mxu0 %v49
  %109 = vmatprep.subr.mxu0 0.0
  %110 = vmatpush1.msra.mxu0 %v50
  %111 = vmatprep.subr.mxu0 0.0
  %112 = vmatpush1.msra.mxu0 %v51
  %113 = vmatprep.subr.mxu0 0.0
  %114 = vmatpush1.msra.mxu0 %v52
  %115 = vmatprep.subr.mxu0 0.0
  %116 = vmatpush1.msra.mxu0 %v53
  %117 = vmatprep.subr.mxu0 0.0
  %118 = vmatpush1.msra.mxu0 %v54
  %119 = vmatprep.subr.mxu0 0.0
  %120 = vmatpush1.msra.mxu0 %v55
  %121 = vmatprep.subr.mxu0 0.0
  %122 = vmatpush1.msra.mxu0 %v56
  %123 = vmatprep.subr.mxu0 0.0
  %124 = vmatpush1.msra.mxu0 %v57
  %125 = vmatprep.subr.mxu0 0.0
  %126 = vmatpush1.msra.mxu0 0.0
  %127 = vmatprep.subr.mxu0 0.0
  %128 = vmatpush1.msra.mxu0 0.0
  %129 = vmatprep.subr.mxu0 0.0
  %130 = vmatpush1.msra.mxu0 0.0
  %131 = vmatprep.subr.mxu0 0.0
  %132 = vmatpush1.msra.mxu0 0.0
  %133 = vmatprep.subr.mxu0 0.0
  %134 = vmatpush1.msra.mxu0 0.0
  %135 = vmatprep.mubr.f32.mxu0 %v60
  %136 = vmatmul.mubr.f32.gmra.mrb[0].mxu0 %v23
  %v137 = vpop.f32.mrb[0].mxu0
  %v138 = vadd.f32 0.0, %v137
  %v139 = vpop.f32.mrb[0].mxu0
  %140 = vmatprep.mubr.f32.mxu0 %v63
  %141 = vmatmul.mubr.f32.gmra.mrb[0].mxu0 %v25
  %v142 = vpop.f32.mrb[0].mxu0
  %v143 = vadd.f32 0.0, %v142
  %v144 = vpop.f32.mrb[0].mxu0
  %145 = vmatprep.mubr.f32.mxu0 %v66
  %146 = vmatmul.mubr.f32.gmra.mrb[0].mxu0 %v27
  %v147 = vpop.f32.mrb[0].mxu0
  %v148 = vadd.f32 0.0, %v147
  %v149 = vpop.f32.mrb[0].mxu0
  %150 = vmatprep.mubr.f32.mxu0 %v69
  %151 = vmatmul.mubr.f32.gmra.mrb[0].mxu0 %v29
  %v152 = vpop.f32.mrb[0].mxu0
  %v153 = vadd.f32 0.0, %v152
  %v154 = vpop.f32.mrb[0].mxu0
  %155 = vdwg.mxu0
  %v156 = vld [vmem:[%s4] sm:$0xff]
  %v157 = vld [vmem:[%s4 + $0x8] sm:$0xff]
  %v158 = vld [vmem:[%s4 + $0x10] sm:$0xff]
  %v159 = vld [vmem:[%s4 + $0x18] sm:$0xff]
  %v160 = vld [vmem:[%s4 + $0x20] sm:$0xff]
  %v161 = vld [vmem:[%s4 + $0x28] sm:$0xff]
  %v162 = vld [vmem:[%s4 + $0x30] sm:$0xff]
  %v163 = vld [vmem:[%s4 + $0x38] sm:$0xff]
  %v164 = vld [vmem:[%s4 + $0x40] sm:$0xff]
  %v165 = vld [vmem:[%s4 + $0x48] sm:$0xff]
  %v166 = vld [vmem:[%s4 + $0x50] sm:$0xff]
  %v167 = vld [vmem:[%s4 + $0x58] sm:$0xff]
  %v168 = vld [vmem:[%s4 + $0x60] sm:$0xff]
  %v169 = vld [vmem:[%s4 + $0x68] sm:$0xff]
  %v170 = vld [vmem:[%s4 + $0x70] sm:$0xff]
  %v171 = vld [vmem:[%s4 + $0x78] sm:$0xff]
  %v172 = vld [vmem:[%s5] sm:$0xff]
  %v173 = vadd.f32 %v138, %v143
  %v174 = vadd.f32 %v173, %v148
  %v175 = vadd.f32 %v174, %v153
  %v176 = vrot.slane %v175, 4
  %v177 = vadd.f32 %v175, %v176
  %v178 = vrot.slane %v177, 2
  %v179 = vadd.f32 %v177, %v178
  %v180 = vrot.slane %v179, 1
  %v181 = vadd.f32 %v179, %v180
  %182 = vmatprep.subr.mxu0 0.0
  %183 = vmatpush1.msra.mxu0 %v156
  %184 = vmatprep.subr.mxu0 0.0
  %185 = vmatpush1.msra.mxu0 %v157
  %186 = vmatprep.subr.mxu0 0.0
  %187 = vmatpush1.msra.mxu0 %v158
  %188 = vmatprep.subr.mxu0 0.0
  %189 = vmatpush1.msra.mxu0 %v159
  %190 = vmatprep.subr.mxu0 0.0
  %191 = vmatpush1.msra.mxu0 %v160
  %192 = vmatprep.subr.mxu0 0.0
  %193 = vmatpush1.msra.mxu0 %v161
  %194 = vmatprep.subr.mxu0 0.0
  %195 = vmatpush1.msra.mxu0 %v162
  %196 = vmatprep.subr.mxu0 0.0
  %197 = vmatpush1.msra.mxu0 %v163
  %198 = vmatprep.subr.mxu0 0.0
  %199 = vmatpush1.msra.mxu0 %v164
  %200 = vmatprep.subr.mxu0 0.0
  %201 = vmatpush1.msra.mxu0 %v165
  %202 = vmatprep.subr.mxu0 0.0
  %203 = vmatpush1.msra.mxu0 %v166
  %204 = vmatprep.subr.mxu0 0.0
  %205 = vmatpush1.msra.mxu0 %v167
  %206 = vmatprep.subr.mxu0 0.0
  %207 = vmatpush1.msra.mxu0 %v168
  %208 = vmatprep.subr.mxu0 0.0
  %209 = vmatpush1.msra.mxu0 %v169
  %210 = vmatprep.subr.mxu0 0.0
  %211 = vmatpush1.msra.mxu0 %v170
  %212 = vmatprep.subr.mxu0 0.0
  %213 = vmatpush1.msra.mxu0 %v171
  %214 = vmatprep.subr.mxu0 0.0
  %215 = vmatpush1.msra.mxu0 0.0
  %216 = vmatprep.subr.mxu0 0.0
  %217 = vmatpush1.msra.mxu0 0.0
  %218 = vmatprep.subr.mxu0 0.0
  %219 = vmatpush1.msra.mxu0 0.0
  %220 = vmatprep.subr.mxu0 0.0
  %221 = vmatpush1.msra.mxu0 0.0
  %222 = vmatprep.subr.mxu0 0.0
  %223 = vmatpush1.msra.mxu0 0.0
  %224 = vmatprep.subr.mxu0 0.0
  %225 = vmatpush1.msra.mxu0 0.0
  %226 = vmatprep.subr.mxu0 0.0
  %227 = vmatpush1.msra.mxu0 0.0
  %228 = vmatprep.subr.mxu0 0.0
  %229 = vmatpush1.msra.mxu0 0.0
  %230 = vmatprep.subr.mxu0 0.0
  %231 = vmatpush1.msra.mxu0 0.0
  %232 = vmatprep.subr.mxu0 0.0
  %233 = vmatpush1.msra.mxu0 0.0
  %234 = vmatprep.subr.mxu0 0.0
  %235 = vmatpush1.msra.mxu0 0.0
  %236 = vmatprep.subr.mxu0 0.0
  %237 = vmatpush1.msra.mxu0 0.0
  %238 = vmatprep.subr.mxu0 0.0
  %239 = vmatpush1.msra.mxu0 0.0
  %240 = vmatprep.subr.mxu0 0.0
  %241 = vmatpush1.msra.mxu0 0.0
  %242 = vmatprep.subr.mxu0 0.0
  %243 = vmatpush1.msra.mxu0 0.0
  %244 = vmatprep.subr.mxu0 0.0
  %245 = vmatpush1.msra.mxu0 0.0
  %246 = vmatprep.mubr.f32.mxu0 0.0
  %247 = vmatmul.mubr.f32.gmra.mrb[0].mxu0 %v181
  %v248 = vpop.f32.mrb[0].mxu0
  %v249 = vadd.f32 0.0, %v248
  %v250 = vpop.f32.mrb[0].mxu0
  %251 = vdwg.mxu0
  %v252 = vrcp.pop 512.0
  %v253 = vmul.f32 %v249, %v252
  %vm254 = vcmask 64512
  %v256 = vsel %vm254, %v253, 0
  %258 = vmatprep.subr.mxu0 0.0
  %259 = vmatpush1.msra.mxu0 %v172
  %260 = vmatprep.subr.mxu0 0.0
  %261 = vmatpush1.msra.mxu0 0.0
  %262 = vmatprep.subr.mxu0 0.0
  %263 = vmatpush1.msra.mxu0 0.0
  %264 = vmatprep.subr.mxu0 0.0
  %265 = vmatpush1.msra.mxu0 0.0
  %266 = vmatprep.subr.mxu0 0.0
  %267 = vmatpush1.msra.mxu0 0.0
  %268 = vmatprep.subr.mxu0 0.0
  %269 = vmatpush1.msra.mxu0 0.0
  %270 = vmatprep.subr.mxu0 0.0
  %271 = vmatpush1.msra.mxu0 0.0
  %272 = vmatprep.subr.mxu0 0.0
  %273 = vmatpush1.msra.mxu0 0.0
  %274 = vmatprep.subr.mxu0 0.0
  %275 = vmatpush1.msra.mxu0 0.0
  %276 = vmatprep.subr.mxu0 0.0
  %277 = vmatpush1.msra.mxu0 0.0
  %278 = vmatprep.subr.mxu0 0.0
  %279 = vmatpush1.msra.mxu0 0.0
  %280 = vmatprep.subr.mxu0 0.0
  %281 = vmatpush1.msra.mxu0 0.0
  %282 = vmatprep.subr.mxu0 0.0
  %283 = vmatpush1.msra.mxu0 0.0
  %284 = vmatprep.subr.mxu0 0.0
  %285 = vmatpush1.msra.mxu0 0.0
  %286 = vmatprep.subr.mxu0 0.0
  %287 = vmatpush1.msra.mxu0 0.0
  %288 = vmatprep.subr.mxu0 0.0
  %289 = vmatpush1.msra.mxu0 0.0
  %290 = vmatprep.subr.mxu0 0.0
  %291 = vmatpush1.msra.mxu0 0.0
  %292 = vmatprep.subr.mxu0 0.0
  %293 = vmatpush1.msra.mxu0 0.0
  %294 = vmatprep.subr.mxu0 0.0
  %295 = vmatpush1.msra.mxu0 0.0
  %296 = vmatprep.subr.mxu0 0.0
  %297 = vmatpush1.msra.mxu0 0.0
  %298 = vmatprep.subr.mxu0 0.0
  %299 = vmatpush1.msra.mxu0 0.0
  %300 = vmatprep.subr.mxu0 0.0
  %301 = vmatpush1.msra.mxu0 0.0
  %302 = vmatprep.subr.mxu0 0.0
  %303 = vmatpush1.msra.mxu0 0.0
  %304 = vmatprep.subr.mxu0 0.0
  %305 = vmatpush1.msra.mxu0 0.0
  %306 = vmatprep.subr.mxu0 0.0
  %307 = vmatpush1.msra.mxu0 0.0
  %308 = vmatprep.subr.mxu0 0.0
  %309 = vmatpush1.msra.mxu0 0.0
  %310 = vmatprep.subr.mxu0 0.0
  %311 = vmatpush1.msra.mxu0 0.0
  %312 = vmatprep.subr.mxu0 0.0
  %313 = vmatpush1.msra.mxu0 0.0
  %314 = vmatprep.subr.mxu0 0.0
  %315 = vmatpush1.msra.mxu0 0.0
  %316 = vmatprep.subr.mxu0 0.0
  %317 = vmatpush1.msra.mxu0 0.0
  %318 = vmatprep.subr.mxu0 0.0
  %319 = vmatpush1.msra.mxu0 0.0
  %320 = vmatprep.subr.mxu0 0.0
  %321 = vmatpush1.msra.mxu0 0.0
  %322 = vmatprep.mubr.f32.mxu0 0.0
  %323 = vmatmul.mubr.f32.gmra.mrb[0].mxu0 %v256
  %v324 = vpop.f32.mrb[0].mxu0
  %v325 = vadd.f32 0.0, %v324
  %v326 = vpop.f32.mrb[0].mxu0
  %327 = vdwg.mxu0
  %v328 = vlaneseq
  %v329 = vshrl.u32 %v328, 7
  %v330 = vsub.s32 0, %v329
  %v331 = vrot.slane %v325, %v330
  %v332 = vsub.f32 %v138, %v331
  %v333 = vsub.f32 %v143, %v331
  %v334 = vsub.f32 %v148, %v331
  %v335 = vsub.f32 %v153, %v331
  %v336 = vmul.f32 %v332, %v332
  %v337 = vmul.f32 %v333, %v333
  %v338 = vmul.f32 %v334, %v334
  %v339 = vmul.f32 %v335, %v335
  %v340 = vadd.f32 %v336, %v337
  %v341 = vadd.f32 %v340, %v338
  %v342 = vadd.f32 %v341, %v339
  %v343 = vrot.slane %v342, 4
  %v344 = vadd.f32 %v342, %v343
  %v345 = vrot.slane %v344, 2
  %v346 = vadd.f32 %v344, %v345
  %v347 = vrot.slane %v346, 1
  %v348 = vadd.f32 %v346, %v347
  %349 = vmatprep.subr.mxu0 0.0
  %350 = vmatpush1.msra.mxu0 %v156
  %351 = vmatprep.subr.mxu0 0.0
  %352 = vmatpush1.msra.mxu0 %v157
  %353 = vmatprep.subr.mxu0 0.0
  %354 = vmatpush1.msra.mxu0 %v158
  %355 = vmatprep.subr.mxu0 0.0
  %356 = vmatpush1.msra.mxu0 %v159
  %357 = vmatprep.subr.mxu0 0.0
  %358 = vmatpush1.msra.mxu0 %v160
  %359 = vmatprep.subr.mxu0 0.0
  %360 = vmatpush1.msra.mxu0 %v161
  %361 = vmatprep.subr.mxu0 0.0
  %362 = vmatpush1.msra.mxu0 %v162
  %363 = vmatprep.subr.mxu0 0.0
  %364 = vmatpush1.msra.mxu0 %v163
  %365 = vmatprep.subr.mxu0 0.0
  %366 = vmatpush1.msra.mxu0 %v164
  %367 = vmatprep.subr.mxu0 0.0
  %368 = vmatpush1.msra.mxu0 %v165
  %369 = vmatprep.subr.mxu0 0.0
  %370 = vmatpush1.msra.mxu0 %v166
  %371 = vmatprep.subr.mxu0 0.0
  %372 = vmatpush1.msra.mxu0 %v167
  %373 = vmatprep.subr.mxu0 0.0
  %374 = vmatpush1.msra.mxu0 %v168
  %375 = vmatprep.subr.mxu0 0.0
  %376 = vmatpush1.msra.mxu0 %v169
  %377 = vmatprep.subr.mxu0 0.0
  %378 = vmatpush1.msra.mxu0 %v170
  %379 = vmatprep.subr.mxu0 0.0
  %380 = vmatpush1.msra.mxu0 %v171
  %381 = vmatprep.subr.mxu0 0.0
  %382 = vmatpush1.msra.mxu0 0.0
  %383 = vmatprep.subr.mxu0 0.0
  %384 = vmatpush1.msra.mxu0 0.0
  %385 = vmatprep.subr.mxu0 0.0
  %386 = vmatpush1.msra.mxu0 0.0
  %387 = vmatprep.subr.mxu0 0.0
  %388 = vmatpush1.msra.mxu0 0.0
  %389 = vmatprep.subr.mxu0 0.0
  %390 = vmatpush1.msra.mxu0 0.0
  %391 = vmatprep.subr.mxu0 0.0
  %392 = vmatpush1.msra.mxu0 0.0
  %393 = vmatprep.subr.mxu0 0.0
  %394 = vmatpush1.msra.mxu0 0.0
  %395 = vmatprep.subr.mxu0 0.0
  %396 = vmatpush1.msra.mxu0 0.0
  %397 = vmatprep.subr.mxu0 0.0
  %398 = vmatpush1.msra.mxu0 0.0
  %399 = vmatprep.subr.mxu0 0.0
  %400 = vmatpush1.msra.mxu0 0.0
  %401 = vmatprep.subr.mxu0 0.0
  %402 = vmatpush1.msra.mxu0 0.0
  %403 = vmatprep.subr.mxu0 0.0
  %404 = vmatpush1.msra.mxu0 0.0
  %405 = vmatprep.subr.mxu0 0.0
  %406 = vmatpush1.msra.mxu0 0.0
  %407 = vmatprep.subr.mxu0 0.0
  %408 = vmatpush1.msra.mxu0 0.0
  %409 = vmatprep.subr.mxu0 0.0
  %410 = vmatpush1.msra.mxu0 0.0
  %411 = vmatprep.subr.mxu0 0.0
  %412 = vmatpush1.msra.mxu0 0.0
  %413 = vmatprep.mubr.f32.mxu0 0.0
  %414 = vmatmul.mubr.f32.gmra.mrb[0].mxu0 %v348
  %v415 = vpop.f32.mrb[0].mxu0
  %v416 = vadd.f32 0.0, %v415
  %v417 = vpop.f32.mrb[0].mxu0
  %418 = vdwg.mxu0
  %v419 = vmul.f32 %v416, %v252
  %v420 = vadd.f32 %v419, 1e-05
  %v421 = vrsqrt.pop %v420
  %v422 = vld [vmem:[%s2] sm:$0x1]
  %v423 = vmul.f32 %v422, %v421
  %v425 = vsel %vm254, %v423, 0
  %427 = vmatprep.subr.mxu0 0.0
  %428 = vmatpush1.msra.mxu0 %v172
  %429 = vmatprep.subr.mxu0 0.0
  %430 = vmatpush1.msra.mxu0 0.0
  %431 = vmatprep.subr.mxu0 0.0
  %432 = vmatpush1.msra.mxu0 0.0
  %433 = vmatprep.subr.mxu0 0.0
  %434 = vmatpush1.msra.mxu0 0.0
  %435 = vmatprep.subr.mxu0 0.0
  %436 = vmatpush1.msra.mxu0 0.0
  %437 = vmatprep.subr.mxu0 0.0
  %438 = vmatpush1.msra.mxu0 0.0
  %439 = vmatprep.subr.mxu0 0.0
  %440 = vmatpush1.msra.mxu0 0.0
  %441 = vmatprep.subr.mxu0 0.0
  %442 = vmatpush1.msra.mxu0 0.0
  %443 = vmatprep.subr.mxu0 0.0
  %444 = vmatpush1.msra.mxu0 0.0
  %445 = vmatprep.subr.mxu0 0.0
  %446 = vmatpush1.msra.mxu0 0.0
  %447 = vmatprep.subr.mxu0 0.0
  %448 = vmatpush1.msra.mxu0 0.0
  %449 = vmatprep.subr.mxu0 0.0
  %450 = vmatpush1.msra.mxu0 0.0
  %451 = vmatprep.subr.mxu0 0.0
  %452 = vmatpush1.msra.mxu0 0.0
  %453 = vmatprep.subr.mxu0 0.0
  %454 = vmatpush1.msra.mxu0 0.0
  %455 = vmatprep.subr.mxu0 0.0
  %456 = vmatpush1.msra.mxu0 0.0
  %457 = vmatprep.subr.mxu0 0.0
  %458 = vmatpush1.msra.mxu0 0.0
  %459 = vmatprep.subr.mxu0 0.0
  %460 = vmatpush1.msra.mxu0 0.0
  %461 = vmatprep.subr.mxu0 0.0
  %462 = vmatpush1.msra.mxu0 0.0
  %463 = vmatprep.subr.mxu0 0.0
  %464 = vmatpush1.msra.mxu0 0.0
  %465 = vmatprep.subr.mxu0 0.0
  %466 = vmatpush1.msra.mxu0 0.0
  %467 = vmatprep.subr.mxu0 0.0
  %468 = vmatpush1.msra.mxu0 0.0
  %469 = vmatprep.subr.mxu0 0.0
  %470 = vmatpush1.msra.mxu0 0.0
  %471 = vmatprep.subr.mxu0 0.0
  %472 = vmatpush1.msra.mxu0 0.0
  %473 = vmatprep.subr.mxu0 0.0
  %474 = vmatpush1.msra.mxu0 0.0
  %475 = vmatprep.subr.mxu0 0.0
  %476 = vmatpush1.msra.mxu0 0.0
  %477 = vmatprep.subr.mxu0 0.0
  %478 = vmatpush1.msra.mxu0 0.0
  %479 = vmatprep.subr.mxu0 0.0
  %480 = vmatpush1.msra.mxu0 0.0
  %481 = vmatprep.subr.mxu0 0.0
  %482 = vmatpush1.msra.mxu0 0.0
  %483 = vmatprep.subr.mxu0 0.0
  %484 = vmatpush1.msra.mxu0 0.0
  %485 = vmatprep.subr.mxu0 0.0
  %486 = vmatpush1.msra.mxu0 0.0
  %487 = vmatprep.subr.mxu0 0.0
  %488 = vmatpush1.msra.mxu0 0.0
  %489 = vmatprep.subr.mxu0 0.0
  %490 = vmatpush1.msra.mxu0 0.0
  %491 = vmatprep.mubr.f32.mxu0 0.0
  %492 = vmatmul.mubr.f32.gmra.mrb[0].mxu0 %v425
  %v493 = vpop.f32.mrb[0].mxu0
  %v494 = vadd.f32 0.0, %v493
  %v495 = vpop.f32.mrb[0].mxu0
  %496 = vdwg.mxu0
  %v497 = vld [vmem:[%s3] sm:$0x1]
  %v499 = vsel %vm254, %v497, 0
  %501 = vmatprep.subr.mxu0 0.0
  %502 = vmatpush1.msra.mxu0 %v172
  %503 = vmatprep.subr.mxu0 0.0
  %504 = vmatpush1.msra.mxu0 0.0
  %505 = vmatprep.subr.mxu0 0.0
  %506 = vmatpush1.msra.mxu0 0.0
  %507 = vmatprep.subr.mxu0 0.0
  %508 = vmatpush1.msra.mxu0 0.0
  %509 = vmatprep.subr.mxu0 0.0
  %510 = vmatpush1.msra.mxu0 0.0
  %511 = vmatprep.subr.mxu0 0.0
  %512 = vmatpush1.msra.mxu0 0.0
  %513 = vmatprep.subr.mxu0 0.0
  %514 = vmatpush1.msra.mxu0 0.0
  %515 = vmatprep.subr.mxu0 0.0
  %516 = vmatpush1.msra.mxu0 0.0
  %517 = vmatprep.subr.mxu0 0.0
  %518 = vmatpush1.msra.mxu0 0.0
  %519 = vmatprep.subr.mxu0 0.0
  %520 = vmatpush1.msra.mxu0 0.0
  %521 = vmatprep.subr.mxu0 0.0
  %522 = vmatpush1.msra.mxu0 0.0
  %523 = vmatprep.subr.mxu0 0.0
  %524 = vmatpush1.msra.mxu0 0.0
  %525 = vmatprep.subr.mxu0 0.0
  %526 = vmatpush1.msra.mxu0 0.0
  %527 = vmatprep.subr.mxu0 0.0
  %528 = vmatpush1.msra.mxu0 0.0
  %529 = vmatprep.subr.mxu0 0.0
  %530 = vmatpush1.msra.mxu0 0.0
  %531 = vmatprep.subr.mxu0 0.0
  %532 = vmatpush1.msra.mxu0 0.0
  %533 = vmatprep.subr.mxu0 0.0
  %534 = vmatpush1.msra.mxu0 0.0
  %535 = vmatprep.subr.mxu0 0.0
  %536 = vmatpush1.msra.mxu0 0.0
  %537 = vmatprep.subr.mxu0 0.0
  %538 = vmatpush1.msra.mxu0 0.0
  %539 = vmatprep.subr.mxu0 0.0
  %540 = vmatpush1.msra.mxu0 0.0
  %541 = vmatprep.subr.mxu0 0.0
  %542 = vmatpush1.msra.mxu0 0.0
  %543 = vmatprep.subr.mxu0 0.0
  %544 = vmatpush1.msra.mxu0 0.0
  %545 = vmatprep.subr.mxu0 0.0
  %546 = vmatpush1.msra.mxu0 0.0
  %547 = vmatprep.subr.mxu0 0.0
  %548 = vmatpush1.msra.mxu0 0.0
  %549 = vmatprep.subr.mxu0 0.0
  %550 = vmatpush1.msra.mxu0 0.0
  %551 = vmatprep.subr.mxu0 0.0
  %552 = vmatpush1.msra.mxu0 0.0
  %553 = vmatprep.subr.mxu0 0.0
  %554 = vmatpush1.msra.mxu0 0.0
  %555 = vmatprep.subr.mxu0 0.0
  %556 = vmatpush1.msra.mxu0 0.0
  %557 = vmatprep.subr.mxu0 0.0
  %558 = vmatpush1.msra.mxu0 0.0
  %559 = vmatprep.subr.mxu0 0.0
  %560 = vmatpush1.msra.mxu0 0.0
  %561 = vmatprep.subr.mxu0 0.0
  %562 = vmatpush1.msra.mxu0 0.0
  %563 = vmatprep.subr.mxu0 0.0
  %564 = vmatpush1.msra.mxu0 0.0
  %565 = vmatprep.mubr.f32.mxu0 0.0
  %566 = vmatmul.mubr.f32.gmra.mrb[0].mxu0 %v499
  %v567 = vpop.f32.mrb[0].mxu0
  %v568 = vadd.f32 0.0, %v567
  %v569 = vpop.f32.mrb[0].mxu0
  %570 = vdwg.mxu0
  %v571 = vlaneseq
  %v572 = vshrl.u32 %v571, 7
  %v573 = vsub.s32 0, %v572
  %v574 = vrot.slane %v494, %v573
  %v575 = vmul.f32 %v332, %v574
  %v576 = vmul.f32 %v333, %v574
  %v577 = vmul.f32 %v334, %v574
  %v578 = vmul.f32 %v335, %v574
  %v579 = vlaneseq
  %v580 = vshrl.u32 %v579, 7
  %v581 = vsub.s32 0, %v580
  %v582 = vrot.slane %v568, %v581
  %v583 = vadd.f32 %v575, %v582
  %v584 = vadd.f32 %v576, %v582
  %v585 = vadd.f32 %v577, %v582
  %v586 = vadd.f32 %v578, %v582
  %v587 = vmax.f32 %v583, 0.0
  %v588 = vmax.f32 %v584, 0.0
  %v589 = vmax.f32 %v585, 0.0
  %v590 = vmax.f32 %v586, 0.0
  %591 = vst [vmem:[%s6] sm:$0xff] %v587
  %592 = vst [vmem:[%s6 + $0x8] sm:$0xff] %v588
  %593 = vst [vmem:[%s6 + $0x10] sm:$0xff] %v589
  %594 = vst [vmem:[%s6 + $0x18] sm:$0xff] %v590
  // Predicated region
  $region26: #{conv_block.1} parent=0 // pred_check
    _
  $region27: #{conv_block.1} parent=0 // pred_check_branch
    %596 = sbr.rel (0) target = $region29
  $region28: #{conv_block.1} parent=0 // pred_region
    _
  $region29: #{conv_block.1} parent=0 // pred_fallthru
    _
  // Predicated region
  $region30: #{conv_block.1} parent=0 // pred_check
    _
  $region31: #{conv_block.1} parent=0 // pred_check_branch
    %598 = sbr.rel (0) target = $region33
  $region32: #{conv_block.1} parent=0 // pred_region
    _
  $region33: #{conv_block.1} parent=0 // pred_fallthru
    _

</llo_original>
